<compile_context>
chip_gen: v7x
topology: tpu7x:2x2x1
jax: 0.10.0
libtpu: 0.0.40
codegen_flags: <defaults>
</compile_context>

<pallas_src>
import jax
import jax.numpy as jnp
from jax import lax
from jax.experimental import pallas as pl
from jax.experimental.pallas import tpu as pltpu


NODE_DIM = 128
HIDDEN_DIM = 64


def _choose_tile(n, tm_max=2048):
    """Atom tile (lane dim): multiple of 128, capped, and chosen so the grid
    has >= 2 steps whenever n > 128 (feeds both v7x TensorCores)."""
    half = (n + 1) // 2
    tm = ((half + 127) // 128) * 128
    return max(128, min(tm, tm_max))


def jit_grad_out(coord, w_embed, w1, b1, w2t, b2, *, tm_max=2048):
    """Fused JitGradOut: returns (energy scalar, dE/dcoord (N, 3))."""
    n = coord.shape[0]
    d, hdim = w1.shape
    assert d == NODE_DIM and hdim == HIDDEN_DIM

    tm = _choose_tile(n, tm_max)
    n_tiles = -(-n // tm)
    n_pad = n_tiles * tm
    last_valid = n - (n_tiles - 1) * tm      # valid atoms in the last tile

    # ---- lane-dense inputs (transposed domain) ----
    coord_t = coord.T.astype(jnp.float32)                     # (3, n)
    if n_pad != n:
        coord_t = jnp.pad(coord_t, ((0, 0), (0, n_pad - n)))  # zero-pad atoms

    we_t = w_embed.T.astype(jnp.float32)                      # (d, 3)   VPU
    w1_t = w1.T.astype(jnp.bfloat16)                          # (h, d)   MXU
    b1_col = b1.reshape(hdim, 1).astype(jnp.float32)          # (h, 1)
    w2_col = w2t.reshape(hdim, 1).astype(jnp.float32)         # (h, 1)
    # folded backward constant:  dE/dcoord^T = (We @ W1) @ dH^T
    wc = (w_embed @ w1).astype(jnp.bfloat16)                  # (3, h)   MXU

    def kernel(cT_ref, weT_ref, w1T_ref, b1_ref, w2_ref, wc_ref,
               acol_ref, gradT_ref):
        cT = cT_ref[...]                         # (3, tm)  f32
        weT = weT_ref[...]                       # (d, 3)   f32

        # synthetic upstream embedding  x^T = We^T @ coord^T  (K=3 -> VPU
        # broadcast-multiplies instead of a wasted MXU pass)
        xT = (weT[:, 0:1] * cT[0:1, :]
              + weT[:, 1:2] * cT[1:2, :]
              + weT[:, 2:3] * cT[2:3, :])        # (d, tm)  f32

        # forward Linear(node_dim -> hidden): h^T = W1^T x^T + b1
        hT = jnp.dot(w1T_ref[...], xT.astype(jnp.bfloat16),
                     preferred_element_type=jnp.float32) + b1_ref[...]  # (h,tm)

        # SiLU: exp on EUP, divide replaced by EUP approx reciprocal
        sig = pl.reciprocal(1.0 + jnp.exp(-hT), approx=True)
        aT = hT * sig                                                   # (h,tm)

        # per-tile energy partial: column-sum SiLU activations (lane reduce);
        # W2 and the +N*b2 bias are applied in the JAX glue.
        if n_pad != n:
            lane = lax.broadcasted_iota(jnp.int32, aT.shape, 1)
            limit = jnp.where(pl.program_id(0) == pl.num_programs(0) - 1,
                              jnp.int32(last_valid), jnp.int32(tm))
            a_sum = jnp.where(lane < limit, aT, 0.0)   # mask padded atoms
        else:
            a_sum = aT
        acol_ref[...] = jnp.sum(a_sum, axis=1, keepdims=True)[None]  # (1,h,1)

        # analytic backward (dE/d(atom_out) = 1):
        #   dSiLU = sig * (1 + h * (1 - sig));  dH = W2^T ⊙ dSiLU
        dsilu = sig * (1.0 + hT * (1.0 - sig))                        # (h,tm)
        dhT = w2_ref[...] * dsilu                                     # (h,tm)
        # folded chain rule through W1 and the synthetic embedding:
        #   dE/dcoord^T = Wc @ dH^T,  Wc = We @ W1  (3, h)
        gradT_ref[...] = jnp.dot(wc_ref[...], dhT.astype(jnp.bfloat16),
                                 preferred_element_type=jnp.float32)  # (3,tm)

    acol, grad_t = pl.pallas_call(
        kernel,
        out_shape=(
            jax.ShapeDtypeStruct((n_tiles, hdim, 1), jnp.float32),  # energy partials
            jax.ShapeDtypeStruct((3, n_pad), jnp.float32),          # dE/dcoord^T
        ),
        grid_spec=pltpu.PrefetchScalarGridSpec(
            num_scalar_prefetch=0,
            grid=(n_tiles,),
            in_specs=[
                pl.BlockSpec((3, tm), lambda i: (0, i)),       # coord^T tile
                pl.BlockSpec((d, 3), lambda i: (0, 0)),        # We^T (full)
                pl.BlockSpec((hdim, d), lambda i: (0, 0)),     # W1^T (full, bf16)
                pl.BlockSpec((hdim, 1), lambda i: (0, 0)),     # b1
                pl.BlockSpec((hdim, 1), lambda i: (0, 0)),     # W2^T
                pl.BlockSpec((3, hdim), lambda i: (0, 0)),     # Wc = We@W1 (bf16)
            ],
            out_specs=[
                pl.BlockSpec((1, hdim, 1), lambda i: (i, 0, 0)),
                pl.BlockSpec((3, tm), lambda i: (0, i)),
            ],
        ),
        compiler_params=pltpu.CompilerParams(
            # every grid step is independent -> let Mosaic shard atom tiles
            # across v7x's two TensorCores.
            dimension_semantics=("parallel",)),
    )(coord_t, we_t, w1_t, b1_col, w2_col, wc)

    col = jnp.sum(acol[:, :, 0], axis=0)                       # (hdim,)
    energy = jnp.sum(col * w2t.reshape(-1)) + jnp.float32(n) * b2
    nuc_grad = grad_t[:, :n].T                                 # drop padding, (N,3)
    return energy, nuc_grad


def forward(coord, w_embed, w1, b1, w2t, b2):
    """Full JitGradOut forward: (energy, nuc_grad)."""
    return jit_grad_out(coord, w_embed, w1, b1, w2t, b2)


if __name__ == "__main__":
    key = jax.random.PRNGKey(0)
    k_c, k_e, k_w1, k_b1, k_w2, k_b2 = jax.random.split(key, 6)

    # small, deliberately NOT a multiple of the tile -> 2 grid steps + masking
    n_atoms = 384
    coord = jax.random.normal(k_c, (n_atoms, 3), dtype=jnp.float32)

    # deterministic parameter init (PyTorch-Linear-like uniform bounds)
    w_embed = jax.random.normal(k_e, (3, NODE_DIM), dtype=jnp.float32) * 0.5
    lim1 = 1.0 / jnp.sqrt(jnp.float32(NODE_DIM))
    w1 = jax.random.uniform(k_w1, (NODE_DIM, HIDDEN_DIM), jnp.float32, -lim1, lim1)
    b1 = jax.random.uniform(k_b1, (1, HIDDEN_DIM), jnp.float32, -lim1, lim1)
    lim2 = 1.0 / jnp.sqrt(jnp.float32(HIDDEN_DIM))
    w2t = jax.random.uniform(k_w2, (1, HIDDEN_DIM), jnp.float32, -lim2, lim2)
    b2 = jax.random.uniform(k_b2, (), jnp.float32, -lim2, lim2)

    energy, nuc_grad = jax.jit(forward)(coord, w_embed, w1, b1, w2t, b2)
    jax.block_until_ready((energy, nuc_grad))

    # pure-JAX autodiff reference to validate the in-kernel analytic backward
    def ref_energy(c):
        x = c @ w_embed
        hh = x @ w1 + b1
        aa = hh * jax.nn.sigmoid(hh)
        return jnp.sum(aa @ w2t.T + b2)

    e_ref, g_ref = jax.value_and_grad(ref_energy)(coord)

    # bf16 MXU operands + EUP approx reciprocal => ~1e-3 relative accuracy;
    # tolerances chosen accordingly (f32 reference).
    assert jnp.allclose(energy, e_ref, rtol=2e-2, atol=0.5), (float(energy), float(e_ref))
    assert jnp.allclose(nuc_grad, g_ref, rtol=2e-2, atol=5e-3), \
        float(jnp.max(jnp.abs(nuc_grad - g_ref)))
    assert nuc_grad.shape == coord.shape

    print("KERNEL_OK")
</pallas_src>

<mosaic_0001>
module attributes {stable_mosaic.version = 11 : i64} {
  func.func @kernel(%arg0: i32, %arg1: memref<3x256xf32, #tpu.memory_space<vmem>>, %arg2: memref<128x3xf32, #tpu.memory_space<vmem>>, %arg3: memref<64x128xbf16, #tpu.memory_space<vmem>>, %arg4: memref<64x1xf32, #tpu.memory_space<vmem>>, %arg5: memref<64x1xf32, #tpu.memory_space<vmem>>, %arg6: memref<3x64xbf16, #tpu.memory_space<vmem>>, %arg7: memref<1x64x1xf32, #tpu.memory_space<vmem>>, %arg8: memref<3x256xf32, #tpu.memory_space<vmem>>) attributes {dimension_semantics = [#tpu.dimension_semantics<parallel>], iteration_bounds = array<i64: 2>, scalar_prefetch = 0 : i64, scratch_operands = 0 : i64, tpu.core_type = #tpu.core_type<tc>, window_params = [{transform_indices = @transform_0, window_bounds = array<i64: 3, 256>}, {pipeline_mode = #tpu.pipeline_mode<synchronous>, transform_indices = @transform_1, window_bounds = array<i64: 128, 3>}, {pipeline_mode = #tpu.pipeline_mode<synchronous>, transform_indices = @transform_2, window_bounds = array<i64: 64, 128>}, {pipeline_mode = #tpu.pipeline_mode<synchronous>, transform_indices = @transform_3, window_bounds = array<i64: 64, 1>}, {pipeline_mode = #tpu.pipeline_mode<synchronous>, transform_indices = @transform_4, window_bounds = array<i64: 64, 1>}, {pipeline_mode = #tpu.pipeline_mode<synchronous>, transform_indices = @transform_5, window_bounds = array<i64: 3, 64>}, {transform_indices = @transform_6, window_bounds = array<i64: 1, 64, 1>}, {transform_indices = @transform_7, window_bounds = array<i64: 3, 256>}]} {
    %c0 = arith.constant 0 : index
    %c0_0 = arith.constant 0 : index
    %0 = vector.load %arg1[%c0, %c0_0] : memref<3x256xf32, #tpu.memory_space<vmem>>, vector<3x256xf32>
    %c0_1 = arith.constant 0 : index
    %c0_2 = arith.constant 0 : index
    %1 = vector.load %arg2[%c0_1, %c0_2] : memref<128x3xf32, #tpu.memory_space<vmem>>, vector<128x3xf32>
    %2 = vector.extract_strided_slice %1 {offsets = [0, 0], sizes = [128, 1], strides = [1, 1]} : vector<128x3xf32> to vector<128x1xf32>
    %3 = vector.extract_strided_slice %0 {offsets = [0, 0], sizes = [1, 256], strides = [1, 1]} : vector<3x256xf32> to vector<1x256xf32>
    %4 = vector.broadcast %2 : vector<128x1xf32> to vector<128x256xf32>
    %5 = vector.broadcast %3 : vector<1x256xf32> to vector<128x256xf32>
    %6 = arith.mulf %4, %5 : vector<128x256xf32>
    %7 = vector.extract_strided_slice %1 {offsets = [0, 1], sizes = [128, 1], strides = [1, 1]} : vector<128x3xf32> to vector<128x1xf32>
    %8 = vector.extract_strided_slice %0 {offsets = [1, 0], sizes = [1, 256], strides = [1, 1]} : vector<3x256xf32> to vector<1x256xf32>
    %9 = vector.broadcast %7 : vector<128x1xf32> to vector<128x256xf32>
    %10 = vector.broadcast %8 : vector<1x256xf32> to vector<128x256xf32>
    %11 = arith.mulf %9, %10 : vector<128x256xf32>
    %12 = arith.addf %6, %11 : vector<128x256xf32>
    %13 = vector.extract_strided_slice %1 {offsets = [0, 2], sizes = [128, 1], strides = [1, 1]} : vector<128x3xf32> to vector<128x1xf32>
    %14 = vector.extract_strided_slice %0 {offsets = [2, 0], sizes = [1, 256], strides = [1, 1]} : vector<3x256xf32> to vector<1x256xf32>
    %15 = vector.broadcast %13 : vector<128x1xf32> to vector<128x256xf32>
    %16 = vector.broadcast %14 : vector<1x256xf32> to vector<128x256xf32>
    %17 = arith.mulf %15, %16 : vector<128x256xf32>
    %18 = arith.addf %12, %17 : vector<128x256xf32>
    %c0_3 = arith.constant 0 : index
    %c0_4 = arith.constant 0 : index
    %19 = vector.load %arg3[%c0_3, %c0_4] : memref<64x128xbf16, #tpu.memory_space<vmem>>, vector<64x128xbf16>
    %20 = arith.truncf %18 : vector<128x256xf32> to vector<128x256xbf16>
    %cst = arith.constant dense<0.000000e+00> : vector<64x256xf32>
    %21 = tpu.matmul %19, %20, %cst {dimension_numbers = #tpu.dot_dimension_numbers<[1], [0], [0], [1], [0, 0, 1, 1], [], []>} : vector<64x128xbf16>, vector<128x256xbf16>, vector<64x256xf32> -> vector<64x256xf32>
    %c0_5 = arith.constant 0 : index
    %c0_6 = arith.constant 0 : index
    %22 = vector.load %arg4[%c0_5, %c0_6] : memref<64x1xf32, #tpu.memory_space<vmem>>, vector<64x1xf32>
    %23 = vector.broadcast %22 : vector<64x1xf32> to vector<64x256xf32>
    %24 = arith.addf %21, %23 : vector<64x256xf32>
    %cst_7 = arith.constant 0.000000e+00 : f32
    %25 = vector.broadcast %cst_7 : f32 to vector<64x256xf32>
    %26 = arith.subf %25, %24 : vector<64x256xf32>
    %27 = math.exp %26 : vector<64x256xf32>
    %cst_8 = arith.constant 1.000000e+00 : f32
    %28 = vector.broadcast %cst_8 : f32 to vector<64x256xf32>
    %29 = arith.addf %28, %27 : vector<64x256xf32>
    %30 = tpu.reciprocal %29 {approx = true} : vector<64x256xf32> -> vector<64x256xf32>
    %31 = arith.mulf %24, %30 : vector<64x256xf32>
    %32 = tpu.iota {dimensions = array<i32: 1>} : vector<64x256xi32>
    %c1_i32 = arith.constant 1 : i32
    %33 = arith.cmpi eq, %arg0, %c1_i32 : i32
    %c128_i32 = arith.constant 128 : i32
    %c256_i32 = arith.constant 256 : i32
    %34 = arith.select %33, %c128_i32, %c256_i32 : i32
    %35 = vector.broadcast %34 : i32 to vector<64x256xi32>
    %36 = arith.cmpi slt, %32, %35 : vector<64x256xi32>
    %cst_9 = arith.constant 0.000000e+00 : f32
    %37 = vector.broadcast %cst_9 : f32 to vector<64x256xf32>
    %38 = arith.select %36, %31, %37 : vector<64x256xi1>, vector<64x256xf32>
    %cst_10 = arith.constant dense<0.000000e+00> : vector<64xf32>
    %39 = vector.multi_reduction <add>, %38, %cst_10 [1] : vector<64x256xf32> to vector<64xf32>
    %40 = vector.shape_cast %39 : vector<64xf32> to vector<64x1xf32>
    %41 = vector.shape_cast %40 : vector<64x1xf32> to vector<1x64x1xf32>
    %c0_11 = arith.constant 0 : index
    %c0_12 = arith.constant 0 : index
    %c0_13 = arith.constant 0 : index
    %42 = vector.load %arg7[%c0_11, %c0_12, %c0_13] : memref<1x64x1xf32, #tpu.memory_space<vmem>>, vector<1x64x1xf32>
    tpu.vector_store %arg7[%c0_11, %c0_12, %c0_13], %41 {strides = array<i32>} : memref<1x64x1xf32, #tpu.memory_space<vmem>>, vector<1x64x1xf32>,
    %cst_14 = arith.constant 1.000000e+00 : f32
    %43 = vector.broadcast %cst_14 : f32 to vector<64x256xf32>
    %44 = arith.subf %43, %30 : vector<64x256xf32>
    %45 = arith.mulf %24, %44 : vector<64x256xf32>
    %cst_15 = arith.constant 1.000000e+00 : f32
    %46 = vector.broadcast %cst_15 : f32 to vector<64x256xf32>
    %47 = arith.addf %46, %45 : vector<64x256xf32>
    %48 = arith.mulf %30, %47 : vector<64x256xf32>
    %c0_16 = arith.constant 0 : index
    %c0_17 = arith.constant 0 : index
    %49 = vector.load %arg5[%c0_16, %c0_17] : memref<64x1xf32, #tpu.memory_space<vmem>>, vector<64x1xf32>
    %50 = vector.broadcast %49 : vector<64x1xf32> to vector<64x256xf32>
    %51 = arith.mulf %50, %48 : vector<64x256xf32>
    %c0_18 = arith.constant 0 : index
    %c0_19 = arith.constant 0 : index
    %52 = vector.load %arg6[%c0_18, %c0_19] : memref<3x64xbf16, #tpu.memory_space<vmem>>, vector<3x64xbf16>
    %53 = arith.truncf %51 : vector<64x256xf32> to vector<64x256xbf16>
    %cst_20 = arith.constant dense<0.000000e+00> : vector<3x256xf32>
    %54 = tpu.matmul %52, %53, %cst_20 {dimension_numbers = #tpu.dot_dimension_numbers<[1], [0], [0], [1], [0, 0, 1, 1], [], []>} : vector<3x64xbf16>, vector<64x256xbf16>, vector<3x256xf32> -> vector<3x256xf32>
    %c0_21 = arith.constant 0 : index
    %c0_22 = arith.constant 0 : index
    %55 = vector.load %arg8[%c0_21, %c0_22] : memref<3x256xf32, #tpu.memory_space<vmem>>, vector<3x256xf32>
    tpu.vector_store %arg8[%c0_21, %c0_22], %54 {strides = array<i32>} : memref<3x256xf32, #tpu.memory_space<vmem>>, vector<3x256xf32>,
    return
  }
  func.func @transform_0(%arg0: i32) -> (i32, i32) {
    %c0_i32 = arith.constant 0 : i32
    %c0_i32_0 = arith.constant 0 : i32
    return %c0_i32, %arg0 : i32, i32
  }
  func.func @transform_1(%arg0: i32) -> (i32, i32) {
    %c0_i32 = arith.constant 0 : i32
    %c0_i32_0 = arith.constant 0 : i32
    %c0_i32_1 = arith.constant 0 : i32
    return %c0_i32, %c0_i32_0 : i32, i32
  }
  func.func @transform_2(%arg0: i32) -> (i32, i32) {
    %c0_i32 = arith.constant 0 : i32
    %c0_i32_0 = arith.constant 0 : i32
    %c0_i32_1 = arith.constant 0 : i32
    return %c0_i32, %c0_i32_0 : i32, i32
  }
  func.func @transform_3(%arg0: i32) -> (i32, i32) {
    %c0_i32 = arith.constant 0 : i32
    %c0_i32_0 = arith.constant 0 : i32
    %c0_i32_1 = arith.constant 0 : i32
    return %c0_i32, %c0_i32_0 : i32, i32
  }
  func.func @transform_4(%arg0: i32) -> (i32, i32) {
    %c0_i32 = arith.constant 0 : i32
    %c0_i32_0 = arith.constant 0 : i32
    %c0_i32_1 = arith.constant 0 : i32
    return %c0_i32, %c0_i32_0 : i32, i32
  }
  func.func @transform_5(%arg0: i32) -> (i32, i32) {
    %c0_i32 = arith.constant 0 : i32
    %c0_i32_0 = arith.constant 0 : i32
    %c0_i32_1 = arith.constant 0 : i32
    return %c0_i32, %c0_i32_0 : i32, i32
  }
  func.func @transform_6(%arg0: i32) -> (i32, i32, i32) {
    %c0_i32 = arith.constant 0 : i32
    %c0_i32_0 = arith.constant 0 : i32
    %c0_i32_1 = arith.constant 0 : i32
    return %arg0, %c0_i32, %c0_i32_0 : i32, i32, i32
  }
  func.func @transform_7(%arg0: i32) -> (i32, i32) {
    %c0_i32 = arith.constant 0 : i32
    %c0_i32_0 = arith.constant 0 : i32
    return %c0_i32, %arg0 : i32, i32
  }
}

</mosaic_0001>

<llo_original>
// kernel: forward.1
$region0: #{forward.1}
  #allocation0 [shape = 'u32[]', space=smem, size = 0x4, offset = 0x4, fixed_abs, tag = 'smem constant byte address 0x4 - core index']
  #allocation1 [shape = 'u32[144,128]{1,0:T(1,128)}', space=vmem, size = 0x12000, scoped, tag = 'internal scratch']
  %s0 = inlined_call_operand.vmem [shape: f32[3,512], index: 0, kind: input, shape index: {}]
  %s1 = inlined_call_operand.vmem [shape: f32[128,3], index: 1, kind: input, shape index: {}]
  %s2 = inlined_call_operand.vmem [shape: bf16[64,128], index: 2, kind: input, shape index: {}]
  %s3 = inlined_call_operand.vmem [shape: f32[64,1], index: 3, kind: input, shape index: {}]
  %s4 = inlined_call_operand.vmem [shape: f32[64,1], index: 4, kind: input, shape index: {}]
  %s5 = inlined_call_operand.vmem [shape: bf16[3,64], index: 5, kind: input, shape index: {}]
  %s6 = inlined_call_operand.vmem [shape: f32[2,64,1], index: 6, kind: output, shape index: {0}]
  %s7 = inlined_call_operand.vmem [shape: f32[3,512], index: 7, kind: output, shape index: {1}]
  %8 = xla_tuple %s6, %s7
  %s9 = sld [smem:[#allocation0]]
  $region65: #{forward.1} parent=0
    _
  %s11 = ssub.s32 1, %s9
  %s12 = scalar_select 0, %s11, %s9
  loop: start=0, step=1, limit=4
  $region2: #{forward.1} parent=0 // loop_pre_header
    _
  $region3: #{forward.1} parent=0 // loop_header
    %s14 = sphi 0, %s18
    %p15 = scmp.ge.s32.totalorder %s14, 4
    %s24 = sphi 0, %s26
    %s27 = sphi 0, %s24
    %s28 = sphi 0, %s27
    %s44 = sphi 0, %s28
    %s48 = sphi 0, %s48
    %s50 = sphi 0, %s48
    %s51 = sphi 0, %s50
    %s65 = sphi 0, %s51
    %s69 = sphi 0, %s69
    %s71 = sphi 0, %s69
    %s72 = sphi 0, %s71
    %s86 = sphi 0, %s72
    %s90 = sphi 0, %s90
    %s92 = sphi 0, %s90
    %s93 = sphi 0, %s92
    %s107 = sphi 0, %s93
    %s111 = sphi 0, %s111
    %s113 = sphi 0, %s111
    %s114 = sphi 0, %s113
    %s128 = sphi 0, %s114
    %s132 = sphi 0, %s132
    %s134 = sphi 0, %s132
    %s135 = sphi 0, %s134
    %s149 = sphi 0, %s135
    %s155 = sphi 0, %s157
    %s158 = sphi 0, %s155
    %s159 = sphi 0, %s158
    %s175 = sphi 0, %s159
    %s181 = sphi 0, %s183
    %s184 = sphi 0, %s181
    %s185 = sphi 0, %s184
    %s201 = sphi 0, %s185
  $region4: #{forward.1} parent=0 // loop_header_branch
    %17 = sbr.rel (%p15) target = $region8
  $region5: #{forward.1} parent=0 // loop_body
    %s19 = ssub.s32 %s14, 1
    %s20 = ssub.s32 %s14, 2
    %s21 = sadd.s32 %s14, 1
    %s22 = ssub.s32 %s14, %s21
    %p23 = scmp.eq.s32.totalorder %s22, 0
    %s25 = sadd.s32 %s24, 1
    %s26 = scalar_select %p23, %s24, %s25
    %p29 = pneg %p23
    %p30 = scmp.eq.s32.totalorder %s14, 1
    %p31 = por %p29, %p30
    %p32 = scmp.ne.s32.totalorder %s24, %s27
    %p33 = scmp.eq.s32.totalorder %s14, 0
    %p34 = por %p32, %p33
    %p35 = scmp.ne.s32.totalorder %s24, %s27
    %p36 = scmp.eq.s32.totalorder %s19, 1
    %p37 = por %p35, %p36
    %p38 = scmp.ne.s32.totalorder %s27, %s28
    %p39 = scmp.eq.s32.totalorder %s19, 0
    %p40 = por %p38, %p39
    %p41 = scmp.ne.s32.totalorder %s27, %s28
    %p42 = scmp.eq.s32.totalorder %s20, 1
    %p43 = por %p41, %p42
    %p45 = scmp.ne.s32.totalorder %s28, %s44
    %p46 = scmp.eq.s32.totalorder %s20, 0
    %p47 = por %p45, %p46
    %s49 = sadd.s32 %s48, 1
    %p52 = scmp.eq.s32.totalorder %s14, 1
    %p53 = scmp.ne.s32.totalorder %s48, %s50
    %p54 = scmp.eq.s32.totalorder %s14, 0
    %p55 = por %p53, %p54
    %p56 = scmp.ne.s32.totalorder %s48, %s50
    %p57 = scmp.eq.s32.totalorder %s19, 1
    %p58 = por %p56, %p57
    %p59 = scmp.ne.s32.totalorder %s50, %s51
    %p60 = scmp.eq.s32.totalorder %s19, 0
    %p61 = por %p59, %p60
    %p62 = scmp.ne.s32.totalorder %s50, %s51
    %p63 = scmp.eq.s32.totalorder %s20, 1
    %p64 = por %p62, %p63
    %p66 = scmp.ne.s32.totalorder %s51, %s65
    %p67 = scmp.eq.s32.totalorder %s20, 0
    %p68 = por %p66, %p67
    %s70 = sadd.s32 %s69, 1
    %p73 = scmp.eq.s32.totalorder %s14, 1
    %p74 = scmp.ne.s32.totalorder %s69, %s71
    %p75 = scmp.eq.s32.totalorder %s14, 0
    %p76 = por %p74, %p75
    %p77 = scmp.ne.s32.totalorder %s69, %s71
    %p78 = scmp.eq.s32.totalorder %s19, 1
    %p79 = por %p77, %p78
    %p80 = scmp.ne.s32.totalorder %s71, %s72
    %p81 = scmp.eq.s32.totalorder %s19, 0
    %p82 = por %p80, %p81
    %p83 = scmp.ne.s32.totalorder %s71, %s72
    %p84 = scmp.eq.s32.totalorder %s20, 1
    %p85 = por %p83, %p84
    %p87 = scmp.ne.s32.totalorder %s72, %s86
    %p88 = scmp.eq.s32.totalorder %s20, 0
    %p89 = por %p87, %p88
    %s91 = sadd.s32 %s90, 1
    %p94 = scmp.eq.s32.totalorder %s14, 1
    %p95 = scmp.ne.s32.totalorder %s90, %s92
    %p96 = scmp.eq.s32.totalorder %s14, 0
    %p97 = por %p95, %p96
    %p98 = scmp.ne.s32.totalorder %s90, %s92
    %p99 = scmp.eq.s32.totalorder %s19, 1
    %p100 = por %p98, %p99
    %p101 = scmp.ne.s32.totalorder %s92, %s93
    %p102 = scmp.eq.s32.totalorder %s19, 0
    %p103 = por %p101, %p102
    %p104 = scmp.ne.s32.totalorder %s92, %s93
    %p105 = scmp.eq.s32.totalorder %s20, 1
    %p106 = por %p104, %p105
    %p108 = scmp.ne.s32.totalorder %s93, %s107
    %p109 = scmp.eq.s32.totalorder %s20, 0
    %p110 = por %p108, %p109
    %s112 = sadd.s32 %s111, 1
    %p115 = scmp.eq.s32.totalorder %s14, 1
    %p116 = scmp.ne.s32.totalorder %s111, %s113
    %p117 = scmp.eq.s32.totalorder %s14, 0
    %p118 = por %p116, %p117
    %p119 = scmp.ne.s32.totalorder %s111, %s113
    %p120 = scmp.eq.s32.totalorder %s19, 1
    %p121 = por %p119, %p120
    %p122 = scmp.ne.s32.totalorder %s113, %s114
    %p123 = scmp.eq.s32.totalorder %s19, 0
    %p124 = por %p122, %p123
    %p125 = scmp.ne.s32.totalorder %s113, %s114
    %p126 = scmp.eq.s32.totalorder %s20, 1
    %p127 = por %p125, %p126
    %p129 = scmp.ne.s32.totalorder %s114, %s128
    %p130 = scmp.eq.s32.totalorder %s20, 0
    %p131 = por %p129, %p130
    %s133 = sadd.s32 %s132, 1
    %p136 = scmp.eq.s32.totalorder %s14, 1
    %p137 = scmp.ne.s32.totalorder %s132, %s134
    %p138 = scmp.eq.s32.totalorder %s14, 0
    %p139 = por %p137, %p138
    %p140 = scmp.ne.s32.totalorder %s132, %s134
    %p141 = scmp.eq.s32.totalorder %s19, 1
    %p142 = por %p140, %p141
    %p143 = scmp.ne.s32.totalorder %s134, %s135
    %p144 = scmp.eq.s32.totalorder %s19, 0
    %p145 = por %p143, %p144
    %p146 = scmp.ne.s32.totalorder %s134, %s135
    %p147 = scmp.eq.s32.totalorder %s20, 1
    %p148 = por %p146, %p147
    %p150 = scmp.ne.s32.totalorder %s135, %s149
    %p151 = scmp.eq.s32.totalorder %s20, 0
    %p152 = por %p150, %p151
    %s153 = ssub.s32 %s14, %s21
    %p154 = scmp.eq.s32.totalorder %s153, 0
    %s156 = sadd.s32 %s155, 1
    %s157 = scalar_select %p154, %s155, %s156
    %p160 = pneg %p154
    %p161 = scmp.eq.s32.totalorder %s14, 1
    %p162 = por %p160, %p161
    %p163 = scmp.ne.s32.totalorder %s155, %s158
    %p164 = scmp.eq.s32.totalorder %s14, 0
    %p165 = por %p163, %p164
    %p166 = scmp.ne.s32.totalorder %s155, %s158
    %p167 = scmp.eq.s32.totalorder %s19, 1
    %p168 = por %p166, %p167
    %p169 = scmp.ne.s32.totalorder %s158, %s159
    %p170 = scmp.eq.s32.totalorder %s19, 0
    %p171 = por %p169, %p170
    %p172 = scmp.ne.s32.totalorder %s158, %s159
    %p173 = scmp.eq.s32.totalorder %s20, 1
    %p174 = por %p172, %p173
    %p176 = scmp.ne.s32.totalorder %s159, %s175
    %p177 = scmp.eq.s32.totalorder %s20, 0
    %p178 = por %p176, %p177
    %s179 = ssub.s32 %s14, %s21
    %p180 = scmp.eq.s32.totalorder %s179, 0
    %s182 = sadd.s32 %s181, 1
    %s183 = scalar_select %p180, %s181, %s182
    %p186 = pneg %p180
    %p187 = scmp.eq.s32.totalorder %s14, 1
    %p188 = por %p186, %p187
    %p189 = scmp.ne.s32.totalorder %s181, %s184
    %p190 = scmp.eq.s32.totalorder %s14, 0
    %p191 = por %p189, %p190
    %p192 = scmp.ne.s32.totalorder %s181, %s184
    %p193 = scmp.eq.s32.totalorder %s19, 1
    %p194 = por %p192, %p193
    %p195 = scmp.ne.s32.totalorder %s184, %s185
    %p196 = scmp.eq.s32.totalorder %s19, 0
    %p197 = por %p195, %p196
    %p198 = scmp.ne.s32.totalorder %s184, %s185
    %p199 = scmp.eq.s32.totalorder %s20, 1
    %p200 = por %p198, %p199
    %p202 = scmp.ne.s32.totalorder %s185, %s201
    %p203 = scmp.eq.s32.totalorder %s20, 0
    %p204 = por %p202, %p203
    %p205 = scmp.le.s32.totalorder 1, %s14
    %p206 = scmp.lt.s32.totalorder %s14, 3
    %p207 = pnand %p205, %p206
    %p208 = pneg %p207
    // Predicated region
    $region9: #{forward.1} parent=5 // pred_check
      _
    $region10: #{forward.1} parent=5 // pred_check_branch
      %210 = sbr.rel (%p207) target = $region12
    $region11: #{forward.1} parent=5 // pred_region
      %s211 = ssub.s32 %s14, 1
      // Predicated region
      $region13: #{forward.1} parent=11 // pred_check
        %p212 = pneg %p61
      $region14: #{forward.1} parent=11 // pred_check_branch
        %214 = sbr.rel (%p212) target = $region16
      $region15: #{forward.1} parent=11 // pred_region
        _
      $region16: #{forward.1} parent=11 // pred_fallthru
        _
      // Predicated region
      $region17: #{forward.1} parent=11 // pred_check
        %p215 = pneg %p82
      $region18: #{forward.1} parent=11 // pred_check_branch
        %217 = sbr.rel (%p215) target = $region20
      $region19: #{forward.1} parent=11 // pred_region
        _
      $region20: #{forward.1} parent=11 // pred_fallthru
        _
      // Predicated region
      $region21: #{forward.1} parent=11 // pred_check
        %p218 = pneg %p103
      $region22: #{forward.1} parent=11 // pred_check_branch
        %220 = sbr.rel (%p218) target = $region24
      $region23: #{forward.1} parent=11 // pred_region
        _
      $region24: #{forward.1} parent=11 // pred_fallthru
        _
      // Predicated region
      $region25: #{forward.1} parent=11 // pred_check
        %p221 = pneg %p124
      $region26: #{forward.1} parent=11 // pred_check_branch
        %223 = sbr.rel (%p221) target = $region28
      $region27: #{forward.1} parent=11 // pred_region
        _
      $region28: #{forward.1} parent=11 // pred_fallthru
        _
      // Predicated region
      $region29: #{forward.1} parent=11 // pred_check
        %p224 = pneg %p145
      $region30: #{forward.1} parent=11 // pred_check_branch
        %226 = sbr.rel (%p224) target = $region32
      $region31: #{forward.1} parent=11 // pred_region
        _
      $region32: #{forward.1} parent=11 // pred_fallthru
        _
    $region12: #{forward.1} parent=5 // pred_fallthru
      _
    %p227 = scmp.lt.s32.totalorder %s14, 2
    // Predicated region
    $region33: #{forward.1} parent=5 // pred_check
      %p228 = pneg %p227
    $region34: #{forward.1} parent=5 // pred_check_branch
      %230 = sbr.rel (%p228) target = $region36
    $region35: #{forward.1} parent=5 // pred_region
      // Predicated region
      $region37: #{forward.1} parent=35 // pred_check
        %p231 = pneg %p34
      $region38: #{forward.1} parent=35 // pred_check_branch
        %233 = sbr.rel (%p231) target = $region40
      $region39: #{forward.1} parent=35 // pred_region
        %s234 = smul.u32 2, %s14
        %p235 = scmp.lt.s32.totalorder %s234, 3
        %s236 = scalar_select %p235, %s234, 3
        %s237 = smul.addr %s236, 4
        %s238 = scalar_lea.vmem %s0, %s237
        %s239 = smul.u32 2, %s14
      $region40: #{forward.1} parent=35 // pred_fallthru
        _
    $region36: #{forward.1} parent=5 // pred_fallthru
      _
    %p240 = scmp.le.s32.totalorder 1, %s14
    %p241 = scmp.lt.s32.totalorder %s14, 3
    %p242 = pnand %p240, %p241
    %p243 = pneg %p242
    // Predicated region
    $region41: #{forward.1} parent=5 // pred_check
      _
    $region42: #{forward.1} parent=5 // pred_check_branch
      %245 = sbr.rel (%p242) target = $region44
    $region43: #{forward.1} parent=5 // pred_region
      %s246 = ssub.s32 %s14, 1
      %s247 = smul.u32 2, %s19
      %p248 = scmp.lt.s32.totalorder %s247, 3
      %s249 = scalar_select %p248, %s247, 3
      %s250 = smul.addr %s249, 4
      %s251 = scalar_lea.vmem %s0, %s250
      %p252 = pneg %p40
      %p253 = pneg %p37
      %p254 = pneg %p61
      %p255 = pneg %p58
      %p256 = pneg %p82
      %p257 = pneg %p79
      %p258 = pneg %p103
      %p259 = pneg %p100
      %p260 = pneg %p124
      %p261 = pneg %p121
      %p262 = pneg %p145
      %p263 = pneg %p142
      %p264 = pneg %p171
      %p265 = pneg %p168
      %p266 = scmp.lt.s32.totalorder %s19, 1
      %s267 = scalar_select %p266, %s19, 1
      %s268 = smul.addr %s267, 8
      %s269 = smul.addr %s268, 8
      %s270 = scalar_lea.vmem %s6, %s269
      %p271 = pneg %p197
      %p272 = pneg %p194
      %s273 = smul.u32 2, %s19
      %p274 = scmp.lt.s32.totalorder %s273, 3
      %s275 = scalar_select %p274, %s273, 3
      %s276 = smul.addr %s275, 4
      %s277 = scalar_lea.vmem %s7, %s276
      %s278 = smul.u32 2, %s19
      %p279 = scmp.lt.s32.totalorder %s278, 3
      %s280 = scalar_select %p279, %s278, 3
      %s281 = smul.addr %s280, 4
      %s282 = scalar_lea.vmem %s0, %s281
      %s283 = smul.u32 2, %s19
      %p284 = scmp.lt.s32.totalorder %s19, 1
      %s285 = scalar_select %p284, %s19, 1
      %s286 = smul.addr %s285, 8
      %s287 = smul.addr %s286, 8
      %s288 = scalar_lea.vmem %s6, %s287
      %s289 = smul.u32 2, %s19
      %p290 = scmp.lt.s32.totalorder %s289, 3
      %s291 = scalar_select %p290, %s289, 3
      %s292 = smul.addr %s291, 4
      %s293 = scalar_lea.vmem %s7, %s292
      %s294 = smul.u32 2, %s19
      %v296 = vld [vmem:[%s282] sm:$0x77]
      %v297 = vld [vmem:[%s1] sm:$0xff]
      %v298 = vld [vmem:[%s1 + $0x8] sm:$0xff]
      %v299 = vld [vmem:[%s1 + $0x10] sm:$0xff]
      %v300 = vld [vmem:[%s1 + $0x18] sm:$0xff]
      %v301 = vld [vmem:[%s1 + $0x20] sm:$0xff]
      %v302 = vld [vmem:[%s1 + $0x28] sm:$0xff]
      %v303 = vld [vmem:[%s1 + $0x30] sm:$0xff]
      %v304 = vld [vmem:[%s1 + $0x38] sm:$0xff]
      %v305 = vld [vmem:[%s1 + $0x40] sm:$0xff]
      %v306 = vld [vmem:[%s1 + $0x48] sm:$0xff]
      %v307 = vld [vmem:[%s1 + $0x50] sm:$0xff]
      %v308 = vld [vmem:[%s1 + $0x58] sm:$0xff]
      %v309 = vld [vmem:[%s1 + $0x60] sm:$0xff]
      %v310 = vld [vmem:[%s1 + $0x68] sm:$0xff]
      %v311 = vld [vmem:[%s1 + $0x70] sm:$0xff]
      %v312 = vld [vmem:[%s1 + $0x78] sm:$0xff]
      %314 = vset.pattern.permute.xlu0 0
      %315 = vperm.xlu0 %314, %v297
      %v316 = vpop.permute.xlu0 %315
      %319 = vset.pattern.permute.xlu0 0
      %320 = vperm.xlu0 %319, %v298
      %v321 = vpop.permute.xlu0 %320
      %324 = vset.pattern.permute.xlu0 0
      %325 = vperm.xlu0 %324, %v299
      %v326 = vpop.permute.xlu0 %325
      %329 = vset.pattern.permute.xlu0 0
      %330 = vperm.xlu0 %329, %v300
      %v331 = vpop.permute.xlu0 %330
      %334 = vset.pattern.permute.xlu0 0
      %335 = vperm.xlu0 %334, %v301
      %v336 = vpop.permute.xlu0 %335
      %339 = vset.pattern.permute.xlu0 0
      %340 = vperm.xlu0 %339, %v302
      %v341 = vpop.permute.xlu0 %340
      %344 = vset.pattern.permute.xlu0 0
      %345 = vperm.xlu0 %344, %v303
      %v346 = vpop.permute.xlu0 %345
      %349 = vset.pattern.permute.xlu0 0
      %350 = vperm.xlu0 %349, %v304
      %v351 = vpop.permute.xlu0 %350
      %354 = vset.pattern.permute.xlu0 0
      %355 = vperm.xlu0 %354, %v305
      %v356 = vpop.permute.xlu0 %355
      %359 = vset.pattern.permute.xlu0 0
      %360 = vperm.xlu0 %359, %v306
      %v361 = vpop.permute.xlu0 %360
      %364 = vset.pattern.permute.xlu0 0
      %365 = vperm.xlu0 %364, %v307
      %v366 = vpop.permute.xlu0 %365
      %369 = vset.pattern.permute.xlu0 0
      %370 = vperm.xlu0 %369, %v308
      %v371 = vpop.permute.xlu0 %370
      %374 = vset.pattern.permute.xlu0 0
      %375 = vperm.xlu0 %374, %v309
      %v376 = vpop.permute.xlu0 %375
      %379 = vset.pattern.permute.xlu0 0
      %380 = vperm.xlu0 %379, %v310
      %v381 = vpop.permute.xlu0 %380
      %384 = vset.pattern.permute.xlu0 0
      %385 = vperm.xlu0 %384, %v311
      %v386 = vpop.permute.xlu0 %385
      %389 = vset.pattern.permute.xlu0 0
      %390 = vperm.xlu0 %389, %v312
      %v391 = vpop.permute.xlu0 %390
      %v394 = vlaneseq
      %v395 = vshrl.u32 %v394, 7
      %v396 = vsub.s32 0, %v395
      %v397 = vrot.slane %v296, %v396
      %v398 = vlaneseq
      %v399 = vshrl.u32 %v398, 7
      %v400 = vsub.s32 4, %v399
      %v401 = vrot.slane %v296, %v400
      %v404 = vlaneseq
      %v405 = vshrl.u32 %v404, 7
      %v406 = vsub.s32 0, %v405
      %v407 = vrot.slane %v397, %v406
      %v408 = vlaneseq
      %v409 = vshrl.u32 %v408, 7
      %v410 = vsub.s32 0, %v409
      %v411 = vrot.slane %v401, %v410
      %v412 = vmul.f32 %v316, %v407
      %v413 = vmul.f32 %v316, %v411
      %v414 = vmul.f32 %v321, %v407
      %v415 = vmul.f32 %v321, %v411
      %v416 = vmul.f32 %v326, %v407
      %v417 = vmul.f32 %v326, %v411
      %v418 = vmul.f32 %v331, %v407
      %v419 = vmul.f32 %v331, %v411
      %v420 = vmul.f32 %v336, %v407
      %v421 = vmul.f32 %v336, %v411
      %v422 = vmul.f32 %v341, %v407
      %v423 = vmul.f32 %v341, %v411
      %v424 = vmul.f32 %v346, %v407
      %v425 = vmul.f32 %v346, %v411
      %v426 = vmul.f32 %v351, %v407
      %v427 = vmul.f32 %v351, %v411
      %v428 = vmul.f32 %v356, %v407
      %v429 = vmul.f32 %v356, %v411
      %v430 = vmul.f32 %v361, %v407
      %v431 = vmul.f32 %v361, %v411
      %v432 = vmul.f32 %v366, %v407
      %v433 = vmul.f32 %v366, %v411
      %v434 = vmul.f32 %v371, %v407
      %v435 = vmul.f32 %v371, %v411
      %v436 = vmul.f32 %v376, %v407
      %v437 = vmul.f32 %v376, %v411
      %v438 = vmul.f32 %v381, %v407
      %v439 = vmul.f32 %v381, %v411
      %v440 = vmul.f32 %v386, %v407
      %v441 = vmul.f32 %v386, %v411
      %v442 = vmul.f32 %v391, %v407
      %v443 = vmul.f32 %v391, %v411
      %444 = vset.pattern.permute.xlu0 1
      %445 = vperm.xlu0 %444, %v297
      %v446 = vpop.permute.xlu0 %445
      %448 = vset.pattern.permute.xlu0 1
      %449 = vperm.xlu0 %448, %v298
      %v450 = vpop.permute.xlu0 %449
      %452 = vset.pattern.permute.xlu0 1
      %453 = vperm.xlu0 %452, %v299
      %v454 = vpop.permute.xlu0 %453
      %456 = vset.pattern.permute.xlu0 1
      %457 = vperm.xlu0 %456, %v300
      %v458 = vpop.permute.xlu0 %457
      %460 = vset.pattern.permute.xlu0 1
      %461 = vperm.xlu0 %460, %v301
      %v462 = vpop.permute.xlu0 %461
      %464 = vset.pattern.permute.xlu0 1
      %465 = vperm.xlu0 %464, %v302
      %v466 = vpop.permute.xlu0 %465
      %468 = vset.pattern.permute.xlu0 1
      %469 = vperm.xlu0 %468, %v303
      %v470 = vpop.permute.xlu0 %469
      %472 = vset.pattern.permute.xlu0 1
      %473 = vperm.xlu0 %472, %v304
      %v474 = vpop.permute.xlu0 %473
      %476 = vset.pattern.permute.xlu0 1
      %477 = vperm.xlu0 %476, %v305
      %v478 = vpop.permute.xlu0 %477
      %480 = vset.pattern.permute.xlu0 1
      %481 = vperm.xlu0 %480, %v306
      %v482 = vpop.permute.xlu0 %481
      %484 = vset.pattern.permute.xlu0 1
      %485 = vperm.xlu0 %484, %v307
      %v486 = vpop.permute.xlu0 %485
      %488 = vset.pattern.permute.xlu0 1
      %489 = vperm.xlu0 %488, %v308
      %v490 = vpop.permute.xlu0 %489
      %492 = vset.pattern.permute.xlu0 1
      %493 = vperm.xlu0 %492, %v309
      %v494 = vpop.permute.xlu0 %493
      %496 = vset.pattern.permute.xlu0 1
      %497 = vperm.xlu0 %496, %v310
      %v498 = vpop.permute.xlu0 %497
      %500 = vset.pattern.permute.xlu0 1
      %501 = vperm.xlu0 %500, %v311
      %v502 = vpop.permute.xlu0 %501
      %504 = vset.pattern.permute.xlu0 1
      %505 = vperm.xlu0 %504, %v312
      %v506 = vpop.permute.xlu0 %505
      %v508 = vlaneseq
      %v509 = vshrl.u32 %v508, 7
      %v510 = vsub.s32 1, %v509
      %v511 = vrot.slane %v296, %v510
      %v512 = vlaneseq
      %v513 = vshrl.u32 %v512, 7
      %v514 = vsub.s32 5, %v513
      %v515 = vrot.slane %v296, %v514
      %v518 = vlaneseq
      %v519 = vshrl.u32 %v518, 7
      %v520 = vsub.s32 1, %v519
      %v521 = vrot.slane %v511, %v520
      %v522 = vlaneseq
      %v523 = vshrl.u32 %v522, 7
      %v524 = vsub.s32 1, %v523
      %v525 = vrot.slane %v515, %v524
      %v526 = vmul.f32 %v446, %v521
      %v527 = vmul.f32 %v446, %v525
      %v528 = vmul.f32 %v450, %v521
      %v529 = vmul.f32 %v450, %v525
      %v530 = vmul.f32 %v454, %v521
      %v531 = vmul.f32 %v454, %v525
      %v532 = vmul.f32 %v458, %v521
      %v533 = vmul.f32 %v458, %v525
      %v534 = vmul.f32 %v462, %v521
      %v535 = vmul.f32 %v462, %v525
      %v536 = vmul.f32 %v466, %v521
      %v537 = vmul.f32 %v466, %v525
      %v538 = vmul.f32 %v470, %v521
      %v539 = vmul.f32 %v470, %v525
      %v540 = vmul.f32 %v474, %v521
      %v541 = vmul.f32 %v474, %v525
      %v542 = vmul.f32 %v478, %v521
      %v543 = vmul.f32 %v478, %v525
      %v544 = vmul.f32 %v482, %v521
      %v545 = vmul.f32 %v482, %v525
      %v546 = vmul.f32 %v486, %v521
      %v547 = vmul.f32 %v486, %v525
      %v548 = vmul.f32 %v490, %v521
      %v549 = vmul.f32 %v490, %v525
      %v550 = vmul.f32 %v494, %v521
      %v551 = vmul.f32 %v494, %v525
      %v552 = vmul.f32 %v498, %v521
      %v553 = vmul.f32 %v498, %v525
      %v554 = vmul.f32 %v502, %v521
      %v555 = vmul.f32 %v502, %v525
      %v556 = vmul.f32 %v506, %v521
      %v557 = vmul.f32 %v506, %v525
      %v558 = vadd.f32 %v412, %v526
      %v559 = vadd.f32 %v413, %v527
      %v560 = vadd.f32 %v414, %v528
      %v561 = vadd.f32 %v415, %v529
      %v562 = vadd.f32 %v416, %v530
      %v563 = vadd.f32 %v417, %v531
      %v564 = vadd.f32 %v418, %v532
      %v565 = vadd.f32 %v419, %v533
      %v566 = vadd.f32 %v420, %v534
      %v567 = vadd.f32 %v421, %v535
      %v568 = vadd.f32 %v422, %v536
      %v569 = vadd.f32 %v423, %v537
      %v570 = vadd.f32 %v424, %v538
      %v571 = vadd.f32 %v425, %v539
      %v572 = vadd.f32 %v426, %v540
      %v573 = vadd.f32 %v427, %v541
      %v574 = vadd.f32 %v428, %v542
      %v575 = vadd.f32 %v429, %v543
      %v576 = vadd.f32 %v430, %v544
      %v577 = vadd.f32 %v431, %v545
      %v578 = vadd.f32 %v432, %v546
      %v579 = vadd.f32 %v433, %v547
      %v580 = vadd.f32 %v434, %v548
      %v581 = vadd.f32 %v435, %v549
      %v582 = vadd.f32 %v436, %v550
      %v583 = vadd.f32 %v437, %v551
      %v584 = vadd.f32 %v438, %v552
      %v585 = vadd.f32 %v439, %v553
      %v586 = vadd.f32 %v440, %v554
      %v587 = vadd.f32 %v441, %v555
      %v588 = vadd.f32 %v442, %v556
      %v589 = vadd.f32 %v443, %v557
      %590 = vset.pattern.permute.xlu0 2
      %591 = vperm.xlu0 %590, %v297
      %v592 = vpop.permute.xlu0 %591
      %594 = vset.pattern.permute.xlu0 2
      %595 = vperm.xlu0 %594, %v298
      %v596 = vpop.permute.xlu0 %595
      %598 = vset.pattern.permute.xlu0 2
      %599 = vperm.xlu0 %598, %v299
      %v600 = vpop.permute.xlu0 %599
      %602 = vset.pattern.permute.xlu0 2
      %603 = vperm.xlu0 %602, %v300
      %v604 = vpop.permute.xlu0 %603
      %606 = vset.pattern.permute.xlu0 2
      %607 = vperm.xlu0 %606, %v301
      %v608 = vpop.permute.xlu0 %607
      %610 = vset.pattern.permute.xlu0 2
      %611 = vperm.xlu0 %610, %v302
      %v612 = vpop.permute.xlu0 %611
      %614 = vset.pattern.permute.xlu0 2
      %615 = vperm.xlu0 %614, %v303
      %v616 = vpop.permute.xlu0 %615
      %618 = vset.pattern.permute.xlu0 2
      %619 = vperm.xlu0 %618, %v304
      %v620 = vpop.permute.xlu0 %619
      %622 = vset.pattern.permute.xlu0 2
      %623 = vperm.xlu0 %622, %v305
      %v624 = vpop.permute.xlu0 %623
      %626 = vset.pattern.permute.xlu0 2
      %627 = vperm.xlu0 %626, %v306
      %v628 = vpop.permute.xlu0 %627
      %630 = vset.pattern.permute.xlu0 2
      %631 = vperm.xlu0 %630, %v307
      %v632 = vpop.permute.xlu0 %631
      %634 = vset.pattern.permute.xlu0 2
      %635 = vperm.xlu0 %634, %v308
      %v636 = vpop.permute.xlu0 %635
      %638 = vset.pattern.permute.xlu0 2
      %639 = vperm.xlu0 %638, %v309
      %v640 = vpop.permute.xlu0 %639
      %642 = vset.pattern.permute.xlu0 2
      %643 = vperm.xlu0 %642, %v310
      %v644 = vpop.permute.xlu0 %643
      %646 = vset.pattern.permute.xlu0 2
      %647 = vperm.xlu0 %646, %v311
      %v648 = vpop.permute.xlu0 %647
      %650 = vset.pattern.permute.xlu0 2
      %651 = vperm.xlu0 %650, %v312
      %v652 = vpop.permute.xlu0 %651
      %v654 = vlaneseq
      %v655 = vshrl.u32 %v654, 7
      %v656 = vsub.s32 2, %v655
      %v657 = vrot.slane %v296, %v656
      %v658 = vlaneseq
      %v659 = vshrl.u32 %v658, 7
      %v660 = vsub.s32 6, %v659
      %v661 = vrot.slane %v296, %v660
      %v664 = vlaneseq
      %v665 = vshrl.u32 %v664, 7
      %v666 = vsub.s32 2, %v665
      %v667 = vrot.slane %v657, %v666
      %v668 = vlaneseq
      %v669 = vshrl.u32 %v668, 7
      %v670 = vsub.s32 2, %v669
      %v671 = vrot.slane %v661, %v670
      %v672 = vmul.f32 %v592, %v667
      %v673 = vmul.f32 %v592, %v671
      %v674 = vmul.f32 %v596, %v667
      %v675 = vmul.f32 %v596, %v671
      %v676 = vmul.f32 %v600, %v667
      %v677 = vmul.f32 %v600, %v671
      %v678 = vmul.f32 %v604, %v667
      %v679 = vmul.f32 %v604, %v671
      %v680 = vmul.f32 %v608, %v667
      %v681 = vmul.f32 %v608, %v671
      %v682 = vmul.f32 %v612, %v667
      %v683 = vmul.f32 %v612, %v671
      %v684 = vmul.f32 %v616, %v667
      %v685 = vmul.f32 %v616, %v671
      %v686 = vmul.f32 %v620, %v667
      %v687 = vmul.f32 %v620, %v671
      %v688 = vmul.f32 %v624, %v667
      %v689 = vmul.f32 %v624, %v671
      %v690 = vmul.f32 %v628, %v667
      %v691 = vmul.f32 %v628, %v671
      %v692 = vmul.f32 %v632, %v667
      %v693 = vmul.f32 %v632, %v671
      %v694 = vmul.f32 %v636, %v667
      %v695 = vmul.f32 %v636, %v671
      %v696 = vmul.f32 %v640, %v667
      %v697 = vmul.f32 %v640, %v671
      %v698 = vmul.f32 %v644, %v667
      %v699 = vmul.f32 %v644, %v671
      %v700 = vmul.f32 %v648, %v667
      %v701 = vmul.f32 %v648, %v671
      %v702 = vmul.f32 %v652, %v667
      %v703 = vmul.f32 %v652, %v671
      %v704 = vadd.f32 %v558, %v672
      %v705 = vadd.f32 %v559, %v673
      %v706 = vadd.f32 %v560, %v674
      %v707 = vadd.f32 %v561, %v675
      %v708 = vadd.f32 %v562, %v676
      %v709 = vadd.f32 %v563, %v677
      %v710 = vadd.f32 %v564, %v678
      %v711 = vadd.f32 %v565, %v679
      %v712 = vadd.f32 %v566, %v680
      %v713 = vadd.f32 %v567, %v681
      %v714 = vadd.f32 %v568, %v682
      %v715 = vadd.f32 %v569, %v683
      %v716 = vadd.f32 %v570, %v684
      %v717 = vadd.f32 %v571, %v685
      %v718 = vadd.f32 %v572, %v686
      %v719 = vadd.f32 %v573, %v687
      %v720 = vadd.f32 %v574, %v688
      %v721 = vadd.f32 %v575, %v689
      %v722 = vadd.f32 %v576, %v690
      %v723 = vadd.f32 %v577, %v691
      %v724 = vadd.f32 %v578, %v692
      %v725 = vadd.f32 %v579, %v693
      %v726 = vadd.f32 %v580, %v694
      %v727 = vadd.f32 %v581, %v695
      %v728 = vadd.f32 %v582, %v696
      %v729 = vadd.f32 %v583, %v697
      %v730 = vadd.f32 %v584, %v698
      %v731 = vadd.f32 %v585, %v699
      %v732 = vadd.f32 %v586, %v700
      %v733 = vadd.f32 %v587, %v701
      %v734 = vadd.f32 %v588, %v702
      %v735 = vadd.f32 %v589, %v703
      %v736 = vld [vmem:[%s2] sm:$0xf]
      %v737 = vld [vmem:[%s2 + $0x4] sm:$0xf]
      %v738 = vld [vmem:[%s2 + $0x8] sm:$0xf]
      %v739 = vld [vmem:[%s2 + $0xc] sm:$0xf]
      %v740 = vld [vmem:[%s2 + $0x10] sm:$0xf]
      %v741 = vld [vmem:[%s2 + $0x14] sm:$0xf]
      %v742 = vld [vmem:[%s2 + $0x18] sm:$0xf]
      %v743 = vld [vmem:[%s2 + $0x1c] sm:$0xf]
      %v744 = vpack.c.bf16 %v706, %v704
      %v745 = vpack.c.bf16 %v707, %v705
      %v746 = vpack.c.bf16 %v710, %v708
      %v747 = vpack.c.bf16 %v711, %v709
      %v748 = vpack.c.bf16 %v714, %v712
      %v749 = vpack.c.bf16 %v715, %v713
      %v750 = vpack.c.bf16 %v718, %v716
      %v751 = vpack.c.bf16 %v719, %v717
      %v752 = vpack.c.bf16 %v722, %v720
      %v753 = vpack.c.bf16 %v723, %v721
      %v754 = vpack.c.bf16 %v726, %v724
      %v755 = vpack.c.bf16 %v727, %v725
      %v756 = vpack.c.bf16 %v730, %v728
      %v757 = vpack.c.bf16 %v731, %v729
      %v758 = vpack.c.bf16 %v734, %v732
      %v759 = vpack.c.bf16 %v735, %v733
      %v760 = vld [vmem:[%s3] sm:$0xff]
      %v761 = vld [vmem:[%s3 + $0x8] sm:$0xff]
      %v762 = vld [vmem:[%s3 + $0x10] sm:$0xff]
      %v763 = vld [vmem:[%s3 + $0x18] sm:$0xff]
      %v764 = vld [vmem:[%s3 + $0x20] sm:$0xff]
      %v765 = vld [vmem:[%s3 + $0x28] sm:$0xff]
      %v766 = vld [vmem:[%s3 + $0x30] sm:$0xff]
      %v767 = vld [vmem:[%s3 + $0x38] sm:$0xff]
      %769 = vset.pattern.permute.xlu0 0
      %770 = vperm.xlu0 %769, %v760
      %v771 = vpop.permute.xlu0 %770
      %774 = vset.pattern.permute.xlu0 0
      %775 = vperm.xlu0 %774, %v761
      %v776 = vpop.permute.xlu0 %775
      %779 = vset.pattern.permute.xlu0 0
      %780 = vperm.xlu0 %779, %v762
      %v781 = vpop.permute.xlu0 %780
      %784 = vset.pattern.permute.xlu0 0
      %785 = vperm.xlu0 %784, %v763
      %v786 = vpop.permute.xlu0 %785
      %789 = vset.pattern.permute.xlu0 0
      %790 = vperm.xlu0 %789, %v764
      %v791 = vpop.permute.xlu0 %790
      %794 = vset.pattern.permute.xlu0 0
      %795 = vperm.xlu0 %794, %v765
      %v796 = vpop.permute.xlu0 %795
      %799 = vset.pattern.permute.xlu0 0
      %800 = vperm.xlu0 %799, %v766
      %v801 = vpop.permute.xlu0 %800
      %804 = vset.pattern.permute.xlu0 0
      %805 = vperm.xlu0 %804, %v767
      %v806 = vpop.permute.xlu0 %805
      %v816 = vunpack.c.l.b16 %v736
      %v817 = vunpack.c.l.b16 %v737
      %v818 = vunpack.c.l.b16 %v738
      %v819 = vunpack.c.l.b16 %v739
      %v820 = vunpack.c.l.b16 %v740
      %v821 = vunpack.c.l.b16 %v741
      %v822 = vunpack.c.l.b16 %v742
      %v823 = vunpack.c.l.b16 %v743
      %v824 = vpack.c.b16 %v817, %v816
      %v825 = vpack.c.b16 %v819, %v818
      %v826 = vpack.c.b16 %v821, %v820
      %v827 = vpack.c.b16 %v823, %v822
      %832 = vmatprep.subr.bf16.mxu0 %v745
      %833 = vmatpush1.bf16.msra.mxu0 %v744
      %834 = vmatprep.subr.bf16.mxu0 %v747
      %835 = vmatpush1.bf16.msra.mxu0 %v746
      %836 = vmatprep.subr.bf16.mxu0 %v749
      %837 = vmatpush1.bf16.msra.mxu0 %v748
      %838 = vmatprep.subr.bf16.mxu0 %v751
      %839 = vmatpush1.bf16.msra.mxu0 %v750
      %840 = vmatprep.subr.bf16.mxu0 %v753
      %841 = vmatpush1.bf16.msra.mxu0 %v752
      %842 = vmatprep.subr.bf16.mxu0 %v755
      %843 = vmatpush1.bf16.msra.mxu0 %v754
      %844 = vmatprep.subr.bf16.mxu0 %v757
      %845 = vmatpush1.bf16.msra.mxu0 %v756
      %846 = vmatprep.subr.bf16.mxu0 %v759
      %847 = vmatpush1.bf16.msra.mxu0 %v758
      %848 = vmatprep.subr.bf16.mxu0 0
      %849 = vmatpush1.bf16.msra.mxu0 0
      %850 = vmatprep.subr.bf16.mxu0 0
      %851 = vmatpush1.bf16.msra.mxu0 0
      %852 = vmatprep.subr.bf16.mxu0 0
      %853 = vmatpush1.bf16.msra.mxu0 0
      %854 = vmatprep.subr.bf16.mxu0 0
      %855 = vmatpush1.bf16.msra.mxu0 0
      %856 = vmatprep.subr.bf16.mxu0 0
      %857 = vmatpush1.bf16.msra.mxu0 0
      %858 = vmatprep.subr.bf16.mxu0 0
      %859 = vmatpush1.bf16.msra.mxu0 0
      %860 = vmatprep.subr.bf16.mxu0 0
      %861 = vmatpush1.bf16.msra.mxu0 0
      %862 = vmatprep.subr.bf16.mxu0 0
      %863 = vmatpush1.bf16.msra.mxu0 0
      %864 = vmatprep.mubr.bf16.mxu0 0
      %865 = vmatmul.mubr.bf16.gmra.mrb[0].mxu0 %v824
      %v866 = vpop.f32.mrb[0].mxu0
      %v867 = vadd.f32 %v771, %v866
      %v868 = vpop.f32.mrb[0].mxu0
      %v869 = vadd.f32 %v771, %v868
      %v870 = vpop.f32.mrb[0].mxu0
      %v871 = vadd.f32 %v776, %v870
      %v872 = vpop.f32.mrb[0].mxu0
      %v873 = vadd.f32 %v776, %v872
      %874 = vmatprep.mubr.bf16.mxu0 0
      %875 = vmatmul.mubr.bf16.gmra.mrb[0].mxu0 %v825
      %v876 = vpop.f32.mrb[0].mxu0
      %v877 = vadd.f32 %v781, %v876
      %v878 = vpop.f32.mrb[0].mxu0
      %v879 = vadd.f32 %v781, %v878
      %v880 = vpop.f32.mrb[0].mxu0
      %v881 = vadd.f32 %v786, %v880
      %v882 = vpop.f32.mrb[0].mxu0
      %v883 = vadd.f32 %v786, %v882
      %884 = vmatprep.mubr.bf16.mxu0 0
      %885 = vmatmul.mubr.bf16.gmra.mrb[0].mxu0 %v826
      %v886 = vpop.f32.mrb[0].mxu0
      %v887 = vadd.f32 %v791, %v886
      %v888 = vpop.f32.mrb[0].mxu0
      %v889 = vadd.f32 %v791, %v888
      %v890 = vpop.f32.mrb[0].mxu0
      %v891 = vadd.f32 %v796, %v890
      %v892 = vpop.f32.mrb[0].mxu0
      %v893 = vadd.f32 %v796, %v892
      %894 = vmatprep.mubr.bf16.mxu0 0
      %895 = vmatmul.mubr.bf16.gmra.mrb[0].mxu0 %v827
      %v896 = vpop.f32.mrb[0].mxu0
      %v897 = vadd.f32 %v801, %v896
      %v898 = vpop.f32.mrb[0].mxu0
      %v899 = vadd.f32 %v801, %v898
      %v900 = vpop.f32.mrb[0].mxu0
      %v901 = vadd.f32 %v806, %v900
      %v902 = vpop.f32.mrb[0].mxu0
      %v903 = vadd.f32 %v806, %v902
      %904 = vdwg.mxu0
      %v905 = vsub.f32 0.0, %v867
      %v906 = vsub.f32 0.0, %v869
      %v907 = vsub.f32 0.0, %v871
      %v908 = vsub.f32 0.0, %v873
      %v909 = vsub.f32 0.0, %v877
      %v910 = vsub.f32 0.0, %v879
      %v911 = vsub.f32 0.0, %v881
      %v912 = vsub.f32 0.0, %v883
      %v913 = vsub.f32 0.0, %v887
      %v914 = vsub.f32 0.0, %v889
      %v915 = vsub.f32 0.0, %v891
      %v916 = vsub.f32 0.0, %v893
      %v917 = vsub.f32 0.0, %v897
      %v918 = vsub.f32 0.0, %v899
      %v919 = vsub.f32 0.0, %v901
      %v920 = vsub.f32 0.0, %v903
      %v921 = vmul.f32 %v905, 1.442695
      %v922 = vpow.pop %v921
      %v923 = vmul.f32 %v906, 1.442695
      %v924 = vpow.pop %v923
      %v925 = vmul.f32 %v907, 1.442695
      %v926 = vpow.pop %v925
      %v927 = vmul.f32 %v908, 1.442695
      %v928 = vpow.pop %v927
      %v929 = vmul.f32 %v909, 1.442695
      %v930 = vpow.pop %v929
      %v931 = vmul.f32 %v910, 1.442695
      %v932 = vpow.pop %v931
      %v933 = vmul.f32 %v911, 1.442695
      %v934 = vpow.pop %v933
      %v935 = vmul.f32 %v912, 1.442695
      %v936 = vpow.pop %v935
      %v937 = vmul.f32 %v913, 1.442695
      %v938 = vpow.pop %v937
      %v939 = vmul.f32 %v914, 1.442695
      %v940 = vpow.pop %v939
      %v941 = vmul.f32 %v915, 1.442695
      %v942 = vpow.pop %v941
      %v943 = vmul.f32 %v916, 1.442695
      %v944 = vpow.pop %v943
      %v945 = vmul.f32 %v917, 1.442695
      %v946 = vpow.pop %v945
      %v947 = vmul.f32 %v918, 1.442695
      %v948 = vpow.pop %v947
      %v949 = vmul.f32 %v919, 1.442695
      %v950 = vpow.pop %v949
      %v951 = vmul.f32 %v920, 1.442695
      %v952 = vpow.pop %v951
      %v953 = vadd.f32 %v922, 1.0
      %v954 = vadd.f32 %v924, 1.0
      %v955 = vadd.f32 %v926, 1.0
      %v956 = vadd.f32 %v928, 1.0
      %v957 = vadd.f32 %v930, 1.0
      %v958 = vadd.f32 %v932, 1.0
      %v959 = vadd.f32 %v934, 1.0
      %v960 = vadd.f32 %v936, 1.0
      %v961 = vadd.f32 %v938, 1.0
      %v962 = vadd.f32 %v940, 1.0
      %v963 = vadd.f32 %v942, 1.0
      %v964 = vadd.f32 %v944, 1.0
      %v965 = vadd.f32 %v946, 1.0
      %v966 = vadd.f32 %v948, 1.0
      %v967 = vadd.f32 %v950, 1.0
      %v968 = vadd.f32 %v952, 1.0
      %v969 = vrcp.pop %v953
      %v970 = vrcp.pop %v954
      %v971 = vrcp.pop %v955
      %v972 = vrcp.pop %v956
      %v973 = vrcp.pop %v957
      %v974 = vrcp.pop %v958
      %v975 = vrcp.pop %v959
      %v976 = vrcp.pop %v960
      %v977 = vrcp.pop %v961
      %v978 = vrcp.pop %v962
      %v979 = vrcp.pop %v963
      %v980 = vrcp.pop %v964
      %v981 = vrcp.pop %v965
      %v982 = vrcp.pop %v966
      %v983 = vrcp.pop %v967
      %v984 = vrcp.pop %v968
      %v985 = vmul.f32 %v867, %v969
      %v986 = vmul.f32 %v869, %v970
      %v987 = vmul.f32 %v871, %v971
      %v988 = vmul.f32 %v873, %v972
      %v989 = vmul.f32 %v877, %v973
      %v990 = vmul.f32 %v879, %v974
      %v991 = vmul.f32 %v881, %v975
      %v992 = vmul.f32 %v883, %v976
      %v993 = vmul.f32 %v887, %v977
      %v994 = vmul.f32 %v889, %v978
      %v995 = vmul.f32 %v891, %v979
      %v996 = vmul.f32 %v893, %v980
      %v997 = vmul.f32 %v897, %v981
      %v998 = vmul.f32 %v899, %v982
      %v999 = vmul.f32 %v901, %v983
      %v1000 = vmul.f32 %v903, %v984
      %v1001 = vlaneseq
      %v1002 = vand.u32 %v1001, 127
      %v1003 = vadd.s32 %v1002, 128
      %p1004 = scmp.eq.s32.totalorder %s19, 1
      %s1005 = scalar_select %p1004, 128, 256
      %v1006 = vstv %s1005
      %vm1007 = vcmp.lt.s32.totalorder %v1002, %v1006
      %vm1008 = vcmp.lt.s32.totalorder %v1003, %v1006
      %v1009 = vsel %vm1007, %v985, 0.0
      %v1010 = vsel %vm1008, %v986, 0.0
      %v1011 = vsel %vm1007, %v987, 0.0
      %v1012 = vsel %vm1008, %v988, 0.0
      %v1013 = vsel %vm1007, %v989, 0.0
      %v1014 = vsel %vm1008, %v990, 0.0
      %v1015 = vsel %vm1007, %v991, 0.0
      %v1016 = vsel %vm1008, %v992, 0.0
      %v1017 = vsel %vm1007, %v993, 0.0
      %v1018 = vsel %vm1008, %v994, 0.0
      %v1019 = vsel %vm1007, %v995, 0.0
      %v1020 = vsel %vm1008, %v996, 0.0
      %v1021 = vsel %vm1007, %v997, 0.0
      %v1022 = vsel %vm1008, %v998, 0.0
      %v1023 = vsel %vm1007, %v999, 0.0
      %v1024 = vsel %vm1008, %v1000, 0.0
      %v1025 = vadd.f32 %v1009, %v1010
      %1026 = vadd.xlane.f32.xlu0 %v1025
      %v1027 = vpop.xlane.xlu0 %1026
      %v1028 = vadd.f32 %v1011, %v1012
      %1029 = vadd.xlane.f32.xlu0 %v1028
      %v1030 = vpop.xlane.xlu0 %1029
      %v1031 = vadd.f32 %v1013, %v1014
      %1032 = vadd.xlane.f32.xlu0 %v1031
      %v1033 = vpop.xlane.xlu0 %1032
      %v1034 = vadd.f32 %v1015, %v1016
      %1035 = vadd.xlane.f32.xlu0 %v1034
      %v1036 = vpop.xlane.xlu0 %1035
      %v1037 = vadd.f32 %v1017, %v1018
      %1038 = vadd.xlane.f32.xlu0 %v1037
      %v1039 = vpop.xlane.xlu0 %1038
      %v1040 = vadd.f32 %v1019, %v1020
      %1041 = vadd.xlane.f32.xlu0 %v1040
      %v1042 = vpop.xlane.xlu0 %1041
      %v1043 = vadd.f32 %v1021, %v1022
      %1044 = vadd.xlane.f32.xlu0 %v1043
      %v1045 = vpop.xlane.xlu0 %1044
      %v1046 = vadd.f32 %v1023, %v1024
      %1047 = vadd.xlane.f32.xlu0 %v1046
      %v1048 = vpop.xlane.xlu0 %1047
      %vm1049 = vcmask 7168
      %1050 = vst.msk [vmem:[%s288] sm:$0xff] %vm1049, %v1027
      %1051 = vst.msk [vmem:[%s288 + $0x8] sm:$0xff] %vm1049, %v1030
      %1052 = vst.msk [vmem:[%s288 + $0x10] sm:$0xff] %vm1049, %v1033
      %1053 = vst.msk [vmem:[%s288 + $0x18] sm:$0xff] %vm1049, %v1036
      %1054 = vst.msk [vmem:[%s288 + $0x20] sm:$0xff] %vm1049, %v1039
      %1055 = vst.msk [vmem:[%s288 + $0x28] sm:$0xff] %vm1049, %v1042
      %1056 = vst.msk [vmem:[%s288 + $0x30] sm:$0xff] %vm1049, %v1045
      %1057 = vst.msk [vmem:[%s288 + $0x38] sm:$0xff] %vm1049, %v1048
      %v1058 = vsub.f32 1.0, %v969
      %v1059 = vsub.f32 1.0, %v970
      %v1060 = vsub.f32 1.0, %v971
      %v1061 = vsub.f32 1.0, %v972
      %v1062 = vsub.f32 1.0, %v973
      %v1063 = vsub.f32 1.0, %v974
      %v1064 = vsub.f32 1.0, %v975
      %v1065 = vsub.f32 1.0, %v976
      %v1066 = vsub.f32 1.0, %v977
      %v1067 = vsub.f32 1.0, %v978
      %v1068 = vsub.f32 1.0, %v979
      %v1069 = vsub.f32 1.0, %v980
      %v1070 = vsub.f32 1.0, %v981
      %v1071 = vsub.f32 1.0, %v982
      %v1072 = vsub.f32 1.0, %v983
      %v1073 = vsub.f32 1.0, %v984
      %v1074 = vmul.f32 %v867, %v1058
      %v1075 = vmul.f32 %v869, %v1059
      %v1076 = vmul.f32 %v871, %v1060
      %v1077 = vmul.f32 %v873, %v1061
      %v1078 = vmul.f32 %v877, %v1062
      %v1079 = vmul.f32 %v879, %v1063
      %v1080 = vmul.f32 %v881, %v1064
      %v1081 = vmul.f32 %v883, %v1065
      %v1082 = vmul.f32 %v887, %v1066
      %v1083 = vmul.f32 %v889, %v1067
      %v1084 = vmul.f32 %v891, %v1068
      %v1085 = vmul.f32 %v893, %v1069
      %v1086 = vmul.f32 %v897, %v1070
      %v1087 = vmul.f32 %v899, %v1071
      %v1088 = vmul.f32 %v901, %v1072
      %v1089 = vmul.f32 %v903, %v1073
      %v1090 = vadd.f32 %v1074, 1.0
      %v1091 = vadd.f32 %v1075, 1.0
      %v1092 = vadd.f32 %v1076, 1.0
      %v1093 = vadd.f32 %v1077, 1.0
      %v1094 = vadd.f32 %v1078, 1.0
      %v1095 = vadd.f32 %v1079, 1.0
      %v1096 = vadd.f32 %v1080, 1.0
      %v1097 = vadd.f32 %v1081, 1.0
      %v1098 = vadd.f32 %v1082, 1.0
      %v1099 = vadd.f32 %v1083, 1.0
      %v1100 = vadd.f32 %v1084, 1.0
      %v1101 = vadd.f32 %v1085, 1.0
      %v1102 = vadd.f32 %v1086, 1.0
      %v1103 = vadd.f32 %v1087, 1.0
      %v1104 = vadd.f32 %v1088, 1.0
      %v1105 = vadd.f32 %v1089, 1.0
      %v1106 = vmul.f32 %v969, %v1090
      %v1107 = vmul.f32 %v970, %v1091
      %v1108 = vmul.f32 %v971, %v1092
      %v1109 = vmul.f32 %v972, %v1093
      %v1110 = vmul.f32 %v973, %v1094
      %v1111 = vmul.f32 %v974, %v1095
      %v1112 = vmul.f32 %v975, %v1096
      %v1113 = vmul.f32 %v976, %v1097
      %v1114 = vmul.f32 %v977, %v1098
      %v1115 = vmul.f32 %v978, %v1099
      %v1116 = vmul.f32 %v979, %v1100
      %v1117 = vmul.f32 %v980, %v1101
      %v1118 = vmul.f32 %v981, %v1102
      %v1119 = vmul.f32 %v982, %v1103
      %v1120 = vmul.f32 %v983, %v1104
      %v1121 = vmul.f32 %v984, %v1105
      %v1122 = vld [vmem:[%s4] sm:$0xff]
      %v1123 = vld [vmem:[%s4 + $0x8] sm:$0xff]
      %v1124 = vld [vmem:[%s4 + $0x10] sm:$0xff]
      %v1125 = vld [vmem:[%s4 + $0x18] sm:$0xff]
      %v1126 = vld [vmem:[%s4 + $0x20] sm:$0xff]
      %v1127 = vld [vmem:[%s4 + $0x28] sm:$0xff]
      %v1128 = vld [vmem:[%s4 + $0x30] sm:$0xff]
      %v1129 = vld [vmem:[%s4 + $0x38] sm:$0xff]
      %1131 = vset.pattern.permute.xlu0 0
      %1132 = vperm.xlu0 %1131, %v1122
      %v1133 = vpop.permute.xlu0 %1132
      %1136 = vset.pattern.permute.xlu0 0
      %1137 = vperm.xlu0 %1136, %v1123
      %v1138 = vpop.permute.xlu0 %1137
      %1141 = vset.pattern.permute.xlu0 0
      %1142 = vperm.xlu0 %1141, %v1124
      %v1143 = vpop.permute.xlu0 %1142
      %1146 = vset.pattern.permute.xlu0 0
      %1147 = vperm.xlu0 %1146, %v1125
      %v1148 = vpop.permute.xlu0 %1147
      %1151 = vset.pattern.permute.xlu0 0
      %1152 = vperm.xlu0 %1151, %v1126
      %v1153 = vpop.permute.xlu0 %1152
      %1156 = vset.pattern.permute.xlu0 0
      %1157 = vperm.xlu0 %1156, %v1127
      %v1158 = vpop.permute.xlu0 %1157
      %1161 = vset.pattern.permute.xlu0 0
      %1162 = vperm.xlu0 %1161, %v1128
      %v1163 = vpop.permute.xlu0 %1162
      %1166 = vset.pattern.permute.xlu0 0
      %1167 = vperm.xlu0 %1166, %v1129
      %v1168 = vpop.permute.xlu0 %1167
      %v1170 = vmul.f32 %v1133, %v1106
      %v1171 = vmul.f32 %v1133, %v1107
      %v1172 = vmul.f32 %v1138, %v1108
      %v1173 = vmul.f32 %v1138, %v1109
      %v1174 = vmul.f32 %v1143, %v1110
      %v1175 = vmul.f32 %v1143, %v1111
      %v1176 = vmul.f32 %v1148, %v1112
      %v1177 = vmul.f32 %v1148, %v1113
      %v1178 = vmul.f32 %v1153, %v1114
      %v1179 = vmul.f32 %v1153, %v1115
      %v1180 = vmul.f32 %v1158, %v1116
      %v1181 = vmul.f32 %v1158, %v1117
      %v1182 = vmul.f32 %v1163, %v1118
      %v1183 = vmul.f32 %v1163, %v1119
      %v1184 = vmul.f32 %v1168, %v1120
      %v1185 = vmul.f32 %v1168, %v1121
      %v1186 = vld [vmem:[%s5] sm:$0x3]
      %v1187 = vpack.c.bf16 %v1172, %v1170
      %v1188 = vpack.c.bf16 %v1173, %v1171
      %v1189 = vpack.c.bf16 %v1176, %v1174
      %v1190 = vpack.c.bf16 %v1177, %v1175
      %v1191 = vpack.c.bf16 %v1180, %v1178
      %v1192 = vpack.c.bf16 %v1181, %v1179
      %v1193 = vpack.c.bf16 %v1184, %v1182
      %v1194 = vpack.c.bf16 %v1185, %v1183
      %vm1195 = vcmask 523264
      %v1197 = vsel %vm1195, %v1186, 0
      %1199 = vmatprep.subr.bf16.mxu0 %v1188
      %1200 = vmatpush1.bf16.msra.mxu0 %v1187
      %1201 = vmatprep.subr.bf16.mxu0 %v1190
      %1202 = vmatpush1.bf16.msra.mxu0 %v1189
      %1203 = vmatprep.subr.bf16.mxu0 %v1192
      %1204 = vmatpush1.bf16.msra.mxu0 %v1191
      %1205 = vmatprep.subr.bf16.mxu0 %v1194
      %1206 = vmatpush1.bf16.msra.mxu0 %v1193
      %1207 = vmatprep.subr.bf16.mxu0 0
      %1208 = vmatpush1.bf16.msra.mxu0 0
      %1209 = vmatprep.subr.bf16.mxu0 0
      %1210 = vmatpush1.bf16.msra.mxu0 0
      %1211 = vmatprep.subr.bf16.mxu0 0
      %1212 = vmatpush1.bf16.msra.mxu0 0
      %1213 = vmatprep.subr.bf16.mxu0 0
      %1214 = vmatpush1.bf16.msra.mxu0 0
      %1215 = vmatprep.subr.bf16.mxu0 0
      %1216 = vmatpush1.bf16.msra.mxu0 0
      %1217 = vmatprep.subr.bf16.mxu0 0
      %1218 = vmatpush1.bf16.msra.mxu0 0
      %1219 = vmatprep.subr.bf16.mxu0 0
      %1220 = vmatpush1.bf16.msra.mxu0 0
      %1221 = vmatprep.subr.bf16.mxu0 0
      %1222 = vmatpush1.bf16.msra.mxu0 0
      %1223 = vmatprep.subr.bf16.mxu0 0
      %1224 = vmatpush1.bf16.msra.mxu0 0
      %1225 = vmatprep.subr.bf16.mxu0 0
      %1226 = vmatpush1.bf16.msra.mxu0 0
      %1227 = vmatprep.subr.bf16.mxu0 0
      %1228 = vmatpush1.bf16.msra.mxu0 0
      %1229 = vmatprep.subr.bf16.mxu0 0
      %1230 = vmatpush1.bf16.msra.mxu0 0
      %1231 = vmatprep.mubr.bf16.mxu0 0
      %1232 = vmatmul.mubr.bf16.gmra.mrb[0].mxu0 %v1197
      %v1233 = vpop.f32.mrb[0].mxu0
      %v1234 = vadd.f32 0.0, %v1233
      %v1235 = vpop.f32.mrb[0].mxu0
      %v1236 = vadd.f32 0.0, %v1235
      %v1237 = vpop.f32.mrb[0].mxu0
      %v1238 = vpop.f32.mrb[0].mxu0
      %1239 = vdwg.mxu0
      %v1242 = vcombine.low %v1234, %v1236
      %1244 = vst [vmem:[%s293] sm:$0x77] %v1242
      %p1245 = scmp.lt.s32.totalorder %s19, 1
      %s1246 = scalar_select %p1245, %s19, 1
      %s1247 = smul.addr %s1246, 8
      %s1248 = smul.addr %s1247, 8
      %s1249 = scalar_lea.vmem %s6, %s1248
      %s1250 = smul.u32 2, %s19
      %p1251 = scmp.lt.s32.totalorder %s1250, 3
      %s1252 = scalar_select %p1251, %s1250, 3
      %s1253 = smul.addr %s1252, 4
      %s1254 = scalar_lea.vmem %s7, %s1253
      // Predicated region
      $region45: #{forward.1} parent=43 // pred_check
        %p1255 = pneg %p168
      $region46: #{forward.1} parent=43 // pred_check_branch
        %1257 = sbr.rel (%p1255) target = $region48
      $region47: #{forward.1} parent=43 // pred_region
        _
      $region48: #{forward.1} parent=43 // pred_fallthru
        _
      // Predicated region
      $region49: #{forward.1} parent=43 // pred_check
        %p1258 = pneg %p194
      $region50: #{forward.1} parent=43 // pred_check_branch
        %1260 = sbr.rel (%p1258) target = $region52
      $region51: #{forward.1} parent=43 // pred_region
        %s1261 = smul.u32 2, %s19
      $region52: #{forward.1} parent=43 // pred_fallthru
        _
    $region44: #{forward.1} parent=5 // pred_fallthru
      _
    %p1262 = scmp.le.s32.totalorder 2, %s14
    // Predicated region
    $region53: #{forward.1} parent=5 // pred_check
      %p1263 = pneg %p1262
    $region54: #{forward.1} parent=5 // pred_check_branch
      %1265 = sbr.rel (%p1263) target = $region56
    $region55: #{forward.1} parent=5 // pred_region
      %s1266 = ssub.s32 %s14, 2
      // Predicated region
      $region57: #{forward.1} parent=55 // pred_check
        %p1267 = pneg %p174
      $region58: #{forward.1} parent=55 // pred_check_branch
        %1269 = sbr.rel (%p1267) target = $region60
      $region59: #{forward.1} parent=55 // pred_region
        %p1270 = scmp.lt.s32.totalorder %s20, 1
        %s1271 = scalar_select %p1270, %s20, 1
        %s1272 = smul.addr %s1271, 8
        %s1273 = smul.addr %s1272, 8
        %s1274 = scalar_lea.vmem %s6, %s1273
      $region60: #{forward.1} parent=55 // pred_fallthru
        _
      // Predicated region
      $region61: #{forward.1} parent=55 // pred_check
        %p1275 = pneg %p200
      $region62: #{forward.1} parent=55 // pred_check_branch
        %1277 = sbr.rel (%p1275) target = $region64
      $region63: #{forward.1} parent=55 // pred_region
        %s1278 = smul.u32 2, %s20
        %p1279 = scmp.lt.s32.totalorder %s1278, 3
        %s1280 = scalar_select %p1279, %s1278, 3
        %s1281 = smul.addr %s1280, 4
        %s1282 = scalar_lea.vmem %s7, %s1281
      $region64: #{forward.1} parent=55 // pred_fallthru
        _
    $region56: #{forward.1} parent=5 // pred_fallthru
      _
  $region6: #{forward.1} parent=0 // loop_footer
    %s18 = sadd.s32 1, %s14
  $region7: #{forward.1} parent=0 // loop_footer_branch
    %13 = sbr.rel target = $region3
  $region8: #{forward.1} parent=0 // loop_exit
    _

</llo_original>
